<compile_context>
chip_gen: v7x
topology: tpu7x:2x2x1
jax: 0.10.0
libtpu: 0.0.40
codegen_flags: <defaults>
</compile_context>

<pallas_src>
import jax
import jax.numpy as jnp
from jax import lax
from jax.experimental import pallas as pl
from jax.experimental.pallas import tpu as pltpu


def _mlp_proj_kernel(x_ref, w_ref, b_ref, o_ref):
    """One (token-tile, batch) step of the linear-embedding projection.

    x_ref: (1, C, tn)   channel-major token tile, ORIGINAL dtype (no pre-cast)
    w_ref: (C, E)       weight, pre-transposed to canonical (K, N), bf16
    b_ref: (1, E)       bias row, f32
    o_ref: (1, tn, E)   output tile
    """
    x = x_ref[0].astype(w_ref.dtype)   # VPU cast, free under a DMA-bound roofline
    # out[t, e] = sum_c x[c, t] * w[c, e]   (LHS contraction on dim 0 == trans_a)
    acc = lax.dot_general(
        x, w_ref[...],
        dimension_numbers=(((0,), (0,)), ((), ())),
        preferred_element_type=jnp.float32,
    )                                   # (tn, E), f32 accumulation on the MXU
    o_ref[0] = (acc + b_ref[...]).astype(o_ref.dtype)


def _pick_token_tile(n, target=1024):
    """Largest token tile <= target keeping activation traffic to one HBM pass."""
    if n <= target:
        return n                        # single tile covers the full token dim
    cap = (min(target, n) // 128) * 128
    for t in range(cap, 0, -128):       # prefer a 128-multiple divisor (no ragged tile)
        if n % t == 0:
            return t
    return cap                          # ragged last block; OOB rows masked on store


def mlp_forward(x_nchw, weight, bias, *, tn=1024, out_dtype=None,
                compute_dtype=jnp.bfloat16):
    """SegFormer MLP forward.

    x_nchw : (B, C, H, W)
    weight : (E, C)   -- torch nn.Linear.weight convention
    bias   : (E,)
    returns: (B, H*W, E)
    """
    B, C, H, W = x_nchw.shape
    E, C_w = weight.shape
    assert C_w == C, "weight in_features must match channel dim"
    N = H * W
    # nn.Linear on f32 produces f32 -> default to the input dtype; pass
    # out_dtype=jnp.bfloat16 to halve output writeback bytes if downstream
    # tolerates it.
    out_dtype = x_nchw.dtype if out_dtype is None else out_dtype

    # Free reshape only -- NO dtype cast, NO pad (no extra HBM passes).
    x3 = x_nchw.reshape(B, C, N)
    w = weight.T.astype(compute_dtype)            # one-time tiny (C, E) copy
    b = bias.astype(jnp.float32).reshape(1, E)

    tn = _pick_token_tile(N, tn)
    n_tiles = pl.cdiv(N, tn)

    in_bytes = x3.dtype.itemsize
    out_bytes = jnp.dtype(out_dtype).itemsize
    w_bytes = jnp.dtype(compute_dtype).itemsize

    cost = pl.CostEstimate(
        flops=2 * B * N * C * E,
        transcendentals=0,
        bytes_accessed=(B * C * N * in_bytes      # activations (single pass)
                        + C * E * w_bytes         # weight
                        + E * 4                   # bias
                        + B * N * E * out_bytes), # output
    )

    # Explicit VMEM budget: double-buffered x tile + out tile, resident weight
    # and bias (2 buffers each by default), ~25% headroom + 2 MiB slack.
    vmem_bytes = int(1.25 * (2 * C * tn * in_bytes
                             + 2 * tn * E * out_bytes
                             + 2 * C * E * w_bytes
                             + 2 * E * 4)) + (2 << 20)
    vmem_bytes = min(max(vmem_bytes, 4 << 20), 64 << 20)   # cap at v7x physical

    out = pl.pallas_call(
        _mlp_proj_kernel,
        out_shape=jax.ShapeDtypeStruct((B, N, E), out_dtype),
        grid_spec=pltpu.PrefetchScalarGridSpec(
            num_scalar_prefetch=0,
            grid=(n_tiles, B),          # token axis leads -> megacore splits it
            in_specs=[
                # Channel-major token tile straight from NCHW layout, original dtype.
                pl.BlockSpec((1, C, tn), lambda n_, b_: (b_, 0, n_)),
                # Full (C, E) weight, constant block index -> fetched once, resident.
                pl.BlockSpec((C, E), lambda n_, b_: (0, 0)),
                # Bias row, resident.
                pl.BlockSpec((1, E), lambda n_, b_: (0, 0)),
            ],
            out_specs=pl.BlockSpec((1, tn, E), lambda n_, b_: (b_, n_, 0)),
        ),
        compiler_params=pltpu.CompilerParams(
            dimension_semantics=("parallel", "parallel"),
            vmem_limit_bytes=vmem_bytes,
        ),
        cost_estimate=cost,
    )(x3, w, b)
    return out


if __name__ == "__main__":
    # Small shapes consistent with the module: input_dim=C, embed_dim=E.
    B, C, H, W = 2, 32, 16, 16
    E = 64

    key = jax.random.PRNGKey(0)
    kx, kw, kb = jax.random.split(key, 3)

    x = jax.random.normal(kx, (B, C, H, W), dtype=jnp.float32)

    # Deterministic nn.Linear-style init: U(-1/sqrt(C), 1/sqrt(C)).
    bound = 1.0 / (C ** 0.5)
    weight = jax.random.uniform(kw, (E, C), minval=-bound, maxval=bound,
                                dtype=jnp.float32)
    bias = jax.random.uniform(kb, (E,), minval=-bound, maxval=bound,
                              dtype=jnp.float32)

    out = mlp_forward(x, weight, bias)
    out = jax.block_until_ready(out)

    # Reference in plain JAX (same math as the torch forward), with the same
    # bf16 rounding the kernel applies to x and w and f32 accumulation.
    xb = x.astype(jnp.bfloat16).astype(jnp.float32)
    wb = weight.astype(jnp.bfloat16).astype(jnp.float32)
    ref = jnp.einsum("bcn,ec->bne", xb.reshape(B, C, H * W), wb,
                     precision=lax.Precision.HIGHEST) + bias

    assert out.shape == (B, H * W, E)
    assert out.dtype == x.dtype
    assert jnp.allclose(out, ref, atol=2e-3, rtol=2e-3)

    print("KERNEL_OK")
</pallas_src>

<mosaic_0001>
module attributes {stable_mosaic.version = 11 : i64} {
  func.func @_mlp_proj_kernel(%arg0: i32, %arg1: i32, %arg2: memref<1x32x256xf32, #tpu.memory_space<vmem>>, %arg3: memref<32x64xbf16, #tpu.memory_space<vmem>>, %arg4: memref<1x64xf32, #tpu.memory_space<vmem>>, %arg5: memref<1x256x64xf32, #tpu.memory_space<vmem>>) attributes {dimension_semantics = [#tpu.dimension_semantics<parallel>, #tpu.dimension_semantics<parallel>], iteration_bounds = array<i64: 1, 2>, scalar_prefetch = 0 : i64, scratch_operands = 0 : i64, tpu.core_type = #tpu.core_type<tc>, window_params = [{transform_indices = @transform_0, window_bounds = array<i64: 1, 32, 256>}, {pipeline_mode = #tpu.pipeline_mode<synchronous>, transform_indices = @transform_1, window_bounds = array<i64: 32, 64>}, {pipeline_mode = #tpu.pipeline_mode<synchronous>, transform_indices = @transform_2, window_bounds = array<i64: 1, 64>}, {transform_indices = @transform_3, window_bounds = array<i64: 1, 256, 64>}]} {
    %c0 = arith.constant 0 : index
    %c0_0 = arith.constant 0 : index
    %c0_1 = arith.constant 0 : index
    %0 = vector.load %arg2[%c0, %c0_0, %c0_1] : memref<1x32x256xf32, #tpu.memory_space<vmem>>, vector<1x32x256xf32>
    %1 = vector.shape_cast %0 : vector<1x32x256xf32> to vector<32x256xf32>
    %2 = arith.truncf %1 : vector<32x256xf32> to vector<32x256xbf16>
    %c0_2 = arith.constant 0 : index
    %c0_3 = arith.constant 0 : index
    %3 = vector.load %arg3[%c0_2, %c0_3] : memref<32x64xbf16, #tpu.memory_space<vmem>>, vector<32x64xbf16>
    %cst = arith.constant dense<0.000000e+00> : vector<256x64xf32>
    %4 = tpu.matmul %2, %3, %cst {dimension_numbers = #tpu.dot_dimension_numbers<[0], [0], [1], [1], [0, 1, 1, 1], [], []>} : vector<32x256xbf16>, vector<32x64xbf16>, vector<256x64xf32> -> vector<256x64xf32>
    %c0_4 = arith.constant 0 : index
    %c0_5 = arith.constant 0 : index
    %5 = vector.load %arg4[%c0_4, %c0_5] : memref<1x64xf32, #tpu.memory_space<vmem>>, vector<1x64xf32>
    %6 = vector.broadcast %5 : vector<1x64xf32> to vector<256x64xf32>
    %7 = arith.addf %4, %6 : vector<256x64xf32>
    %c0_6 = arith.constant 0 : index
    %c0_7 = arith.constant 0 : index
    %c0_8 = arith.constant 0 : index
    %8 = vector.load %arg5[%c0_6, %c0_7, %c0_8] : memref<1x256x64xf32, #tpu.memory_space<vmem>>, vector<1x256x64xf32>
    %9 = vector.shape_cast %8 : vector<1x256x64xf32> to vector<256x64xf32>
    %10 = vector.shape_cast %7 : vector<256x64xf32> to vector<1x256x64xf32>
    tpu.vector_store %arg5[%c0_6, %c0_7, %c0_8], %10 {strides = array<i32>} : memref<1x256x64xf32, #tpu.memory_space<vmem>>, vector<1x256x64xf32>,
    return
  }
  func.func @transform_0(%arg0: i32, %arg1: i32) -> (i32, i32, i32) {
    %c0_i32 = arith.constant 0 : i32
    %c0_i32_0 = arith.constant 0 : i32
    return %arg1, %c0_i32, %arg0 : i32, i32, i32
  }
  func.func @transform_1(%arg0: i32, %arg1: i32) -> (i32, i32) {
    %c0_i32 = arith.constant 0 : i32
    %c0_i32_0 = arith.constant 0 : i32
    %c0_i32_1 = arith.constant 0 : i32
    return %c0_i32, %c0_i32_0 : i32, i32
  }
  func.func @transform_2(%arg0: i32, %arg1: i32) -> (i32, i32) {
    %c0_i32 = arith.constant 0 : i32
    %c0_i32_0 = arith.constant 0 : i32
    %c0_i32_1 = arith.constant 0 : i32
    return %c0_i32, %c0_i32_0 : i32, i32
  }
  func.func @transform_3(%arg0: i32, %arg1: i32) -> (i32, i32, i32) {
    %c0_i32 = arith.constant 0 : i32
    %c0_i32_0 = arith.constant 0 : i32
    return %arg1, %arg0, %c0_i32 : i32, i32, i32
  }
}

</mosaic_0001>

<llo_original>
// kernel: tpu_custom_call.1
$region0: #{tpu_custom_call.1}
  #allocation0 [shape = 'u32[]', space=smem, size = 0x4, offset = 0x4, fixed_abs, tag = 'smem constant byte address 0x4 - core index']
  #allocation1 [shape = 'u32[144,128]{1,0:T(1,128)}', space=vmem, size = 0x12000, scoped, tag = 'internal scratch']
  %s0 = inlined_call_operand.hbm [shape: f32[2,32,256], index: 0, kind: input, shape index: {}]
  %s1 = inlined_call_operand.hbm [shape: bf16[32,64], index: 1, kind: input, shape index: {}]
  %s2 = inlined_call_operand.vmem [shape: f32[1,64], index: 2, kind: input, shape index: {}]
  %s3 = inlined_call_operand.vmem [shape: f32[2,256,64], index: 3, kind: output, shape index: {}]
  %s4 = sld [smem:[#allocation0]]
  $region53: #{tpu_custom_call.1} parent=0
    _
  %s6 = ssub.s32 1, %s4
  %s7 = scalar_select 0, %s6, %s4
  $region1: #{tpu_custom_call.1} parent=0
    #allocation2 [shape = 'u8[65536]{0}', space=vmem, size = 0x10000, scoped, tag = 'input window, operand 0']
    #allocation3 [shape = 's32[2]{0}', space=sflag, size = 0x8, scoped, tag = 'scoped memory for tpu_custom_call.1']
    #allocation4 [shape = 'u8[8192]{0}', space=vmem, size = 0x2000, scoped, tag = 'input window, operand 1, single buffered']
    #allocation5 [shape = 's32[1]{0}', space=sflag, size = 0x4, scoped, tag = 'scoped memory for tpu_custom_call.1']
    %8 = vsyncpa [#allocation3], 0
    %s9 = scalar_lea.sflag [#allocation3], 1
    %10 = vsyncpa %s9, 0
    %11 = vsyncpa [#allocation5], 0
    loop: start=0, step=1, limit=4
    $region2: #{tpu_custom_call.1} parent=1 // loop_pre_header
      _
    $region3: #{tpu_custom_call.1} parent=1 // loop_header
      %s13 = sphi 0, %s17
      %p14 = scmp.ge.s32.totalorder %s13, 4
      %s20 = sphi 0, %s32
      %s21 = sphi 0, %s28
      %s22 = sphi 0, %s20
      %s23 = sphi 0, %s21
      %s24 = sphi 0, %s22
      %s25 = sphi 0, %s23
      %s37 = sphi 0, %s39
      %s40 = sphi 0, %s37
      %s41 = sphi 0, %s40
      %s57 = sphi 0, %s41
      %s61 = sphi 0, %s61
      %s63 = sphi 0, %s61
      %s64 = sphi 0, %s63
      %s78 = sphi 0, %s64
      %s82 = sphi 0, %s82
      %s84 = sphi 0, %s82
      %s85 = sphi 0, %s84
      %s99 = sphi 0, %s85
      %s107 = sphi 0, %s109
      %s110 = sphi 0, %s107
      %s111 = sphi 0, %s110
      %s127 = sphi 0, %s111
    $region4: #{tpu_custom_call.1} parent=1 // loop_header_branch
      %16 = sbr.rel (%p14) target = $region8
    $region5: #{tpu_custom_call.1} parent=1 // loop_body
      %s18 = ssub.s32 %s13, 1
      %s19 = ssub.s32 %s13, 2
      %s26 = sadd.s32 1, %s21
      %p27 = scmp.ge.s32.totalorder %s26, 2
      %s28 = scalar_select %p27, 0, %s26
      %s29 = sadd.s32 1, %s20
      %s30 = scalar_select %p27, %s29, %s20
      %p31 = scmp.ge.s32.totalorder %s30, 1
      %s32 = scalar_select %p31, 0, %s30
      %s33 = ssub.s32 %s21, %s28
      %s34 = ssub.s32 %s20, %s32
      %s35 = sor.u32 %s33, %s34
      %p36 = scmp.eq.s32.totalorder %s35, 0
      %s38 = sadd.s32 %s37, 1
      %s39 = scalar_select %p36, %s37, %s38
      %p42 = pneg %p36
      %p43 = scmp.eq.s32.totalorder %s13, 1
      %p44 = por %p42, %p43
      %p45 = scmp.ne.s32.totalorder %s37, %s40
      %p46 = scmp.eq.s32.totalorder %s13, 0
      %p47 = por %p45, %p46
      %p48 = scmp.ne.s32.totalorder %s37, %s40
      %p49 = scmp.eq.s32.totalorder %s18, 1
      %p50 = por %p48, %p49
      %p51 = scmp.ne.s32.totalorder %s40, %s41
      %p52 = scmp.eq.s32.totalorder %s18, 0
      %p53 = por %p51, %p52
      %p54 = scmp.ne.s32.totalorder %s40, %s41
      %p55 = scmp.eq.s32.totalorder %s19, 1
      %p56 = por %p54, %p55
      %p58 = scmp.ne.s32.totalorder %s41, %s57
      %p59 = scmp.eq.s32.totalorder %s19, 0
      %p60 = por %p58, %p59
      %s62 = sadd.s32 %s61, 1
      %p65 = scmp.eq.s32.totalorder %s13, 1
      %p66 = scmp.ne.s32.totalorder %s61, %s63
      %p67 = scmp.eq.s32.totalorder %s13, 0
      %p68 = por %p66, %p67
      %p69 = scmp.ne.s32.totalorder %s61, %s63
      %p70 = scmp.eq.s32.totalorder %s18, 1
      %p71 = por %p69, %p70
      %p72 = scmp.ne.s32.totalorder %s63, %s64
      %p73 = scmp.eq.s32.totalorder %s18, 0
      %p74 = por %p72, %p73
      %p75 = scmp.ne.s32.totalorder %s63, %s64
      %p76 = scmp.eq.s32.totalorder %s19, 1
      %p77 = por %p75, %p76
      %p79 = scmp.ne.s32.totalorder %s64, %s78
      %p80 = scmp.eq.s32.totalorder %s19, 0
      %p81 = por %p79, %p80
      %s83 = sadd.s32 %s82, 1
      %p86 = scmp.eq.s32.totalorder %s13, 1
      %p87 = scmp.ne.s32.totalorder %s82, %s84
      %p88 = scmp.eq.s32.totalorder %s13, 0
      %p89 = por %p87, %p88
      %p90 = scmp.ne.s32.totalorder %s82, %s84
      %p91 = scmp.eq.s32.totalorder %s18, 1
      %p92 = por %p90, %p91
      %p93 = scmp.ne.s32.totalorder %s84, %s85
      %p94 = scmp.eq.s32.totalorder %s18, 0
      %p95 = por %p93, %p94
      %p96 = scmp.ne.s32.totalorder %s84, %s85
      %p97 = scmp.eq.s32.totalorder %s19, 1
      %p98 = por %p96, %p97
      %p100 = scmp.ne.s32.totalorder %s85, %s99
      %p101 = scmp.eq.s32.totalorder %s19, 0
      %p102 = por %p100, %p101
      %s103 = ssub.s32 %s21, %s28
      %s104 = ssub.s32 %s20, %s32
      %s105 = sor.u32 %s103, %s104
      %p106 = scmp.eq.s32.totalorder %s105, 0
      %s108 = sadd.s32 %s107, 1
      %s109 = scalar_select %p106, %s107, %s108
      %p112 = pneg %p106
      %p113 = scmp.eq.s32.totalorder %s13, 1
      %p114 = por %p112, %p113
      %p115 = scmp.ne.s32.totalorder %s107, %s110
      %p116 = scmp.eq.s32.totalorder %s13, 0
      %p117 = por %p115, %p116
      %p118 = scmp.ne.s32.totalorder %s107, %s110
      %p119 = scmp.eq.s32.totalorder %s18, 1
      %p120 = por %p118, %p119
      %p121 = scmp.ne.s32.totalorder %s110, %s111
      %p122 = scmp.eq.s32.totalorder %s18, 0
      %p123 = por %p121, %p122
      %p124 = scmp.ne.s32.totalorder %s110, %s111
      %p125 = scmp.eq.s32.totalorder %s19, 1
      %p126 = por %p124, %p125
      %p128 = scmp.ne.s32.totalorder %s111, %s127
      %p129 = scmp.eq.s32.totalorder %s19, 0
      %p130 = por %p128, %p129
      %p131 = scmp.le.s32.totalorder 1, %s13
      %p132 = scmp.lt.s32.totalorder %s13, 3
      %p133 = pnand %p131, %p132
      %p134 = pneg %p133
      // Predicated region
      $region9: #{tpu_custom_call.1} parent=5 // pred_check
        _
      $region10: #{tpu_custom_call.1} parent=5 // pred_check_branch
        %136 = sbr.rel (%p133) target = $region12
      $region11: #{tpu_custom_call.1} parent=5 // pred_region
        %s137 = ssub.s32 %s13, 1
        // Predicated region
        $region13: #{tpu_custom_call.1} parent=11 // pred_check
          %p138 = pneg %p74
        $region14: #{tpu_custom_call.1} parent=11 // pred_check_branch
          %140 = sbr.rel (%p138) target = $region16
        $region15: #{tpu_custom_call.1} parent=11 // pred_region
          %s142 = ssub.s32 256, 256
          %143 = vsyncadd [#allocation5], %s142
          %s144 = sshll.u32 [#allocation4], 4
          %s145 = int_to_ptr.vmem [resolvable:$true] %s144
          %150 = dma.hbm_to_vmem [thread:$0]  %s1, 256, %s145, [#allocation5], 64, 64, 4
        $region16: #{tpu_custom_call.1} parent=11 // pred_fallthru
          _
        // Predicated region
        $region17: #{tpu_custom_call.1} parent=11 // pred_check
          %p151 = pneg %p95
        $region18: #{tpu_custom_call.1} parent=11 // pred_check_branch
          %153 = sbr.rel (%p151) target = $region20
        $region19: #{tpu_custom_call.1} parent=11 // pred_region
          _
        $region20: #{tpu_custom_call.1} parent=11 // pred_fallthru
          _
      $region12: #{tpu_custom_call.1} parent=5 // pred_fallthru
        _
      %p154 = scmp.lt.s32.totalorder %s13, 2
      // Predicated region
      $region21: #{tpu_custom_call.1} parent=5 // pred_check
        %p155 = pneg %p154
      $region22: #{tpu_custom_call.1} parent=5 // pred_check_branch
        %157 = sbr.rel (%p155) target = $region24
      $region23: #{tpu_custom_call.1} parent=5 // pred_region
        // Predicated region
        $region25: #{tpu_custom_call.1} parent=23 // pred_check
          %p158 = pneg %p47
        $region26: #{tpu_custom_call.1} parent=23 // pred_check_branch
          %160 = sbr.rel (%p158) target = $region28
        $region27: #{tpu_custom_call.1} parent=23 // pred_region
          %s161 = sand.u32 %s37, 1
          %s162 = scalar_lea.sflag [#allocation3], %s161
          %s163 = sand.u32 %s37, 1
          %s164 = smul.addr %s163, 64
          %s165 = scalar_lea.vmem [#allocation2], %s164
          %s166 = smul.u32 2, %s20
          %s168 = ssub.s32 1024, 1024
          %169 = vsyncadd %s162, %s168
          %s170 = smul.addr %s21, 8
          %s171 = sadd.s32 %s166, %s170
          %s172 = smul.addr %s171, 128
          %s173 = scalar_lea.hbm %s0, %s172
          %s174 = sshll.u32 %s165, 4
          %s175 = int_to_ptr.vmem [resolvable:$true] %s174
          %180 = dma.hbm_to_vmem [thread:$0]  %s173, 1024, %s175, %s162, 256, 256, 16
        $region28: #{tpu_custom_call.1} parent=23 // pred_fallthru
          _
      $region24: #{tpu_custom_call.1} parent=5 // pred_fallthru
        _
      %p181 = scmp.le.s32.totalorder 1, %s13
      %p182 = scmp.lt.s32.totalorder %s13, 3
      %p183 = pnand %p181, %p182
      %p184 = pneg %p183
      // Predicated region
      $region29: #{tpu_custom_call.1} parent=5 // pred_check
        _
      $region30: #{tpu_custom_call.1} parent=5 // pred_check_branch
        %186 = sbr.rel (%p183) target = $region32
      $region31: #{tpu_custom_call.1} parent=5 // pred_region
        %s187 = ssub.s32 %s13, 1
        %s188 = sand.u32 %s40, 1
        %s189 = scalar_lea.sflag [#allocation3], %s188
        %s190 = sand.u32 %s40, 1
        %s191 = smul.addr %s190, 64
        %s192 = scalar_lea.vmem [#allocation2], %s191
        // Predicated region
        $region33: #{tpu_custom_call.1} parent=31 // pred_check
          %p193 = pneg %p53
        $region34: #{tpu_custom_call.1} parent=31 // pred_check_branch
          %195 = sbr.rel (%p193) target = $region36
        $region35: #{tpu_custom_call.1} parent=31 // pred_region
          %196 = dma.done %s189, 1024
        $region36: #{tpu_custom_call.1} parent=31 // pred_fallthru
          _
        // Predicated region
        $region37: #{tpu_custom_call.1} parent=31 // pred_check
          %p197 = pneg %p74
        $region38: #{tpu_custom_call.1} parent=31 // pred_check_branch
          %199 = sbr.rel (%p197) target = $region40
        $region39: #{tpu_custom_call.1} parent=31 // pred_region
          %200 = dma.done [#allocation5], 256
        $region40: #{tpu_custom_call.1} parent=31 // pred_fallthru
          _
        %s201 = sand.u32 %s40, 1
        %s202 = scalar_lea.sflag [#allocation3], %s201
        %s203 = sand.u32 %s40, 1
        %s204 = smul.addr %s203, 64
        %s205 = scalar_lea.vmem [#allocation2], %s204
        %p206 = pneg %p53
        %p207 = pneg %p50
        %p208 = pneg %p74
        %p209 = pneg %p71
        %p210 = pneg %p95
        %p211 = pneg %p92
        %p212 = pneg %p123
        %p213 = pneg %p120
        %s214 = smul.u32 32, %s22
        %p215 = scmp.lt.s32.totalorder %s23, 1
        %s216 = scalar_select %p215, %s23, 1
        %p217 = scmp.lt.s32.totalorder %s214, 31
        %s218 = scalar_select %p217, %s214, 31
        %s219 = smul.addr %s216, 32
        %s220 = sadd.s32 %s218, %s219
        %s221 = smul.addr %s220, 8
        %s222 = scalar_lea.vmem %s3, %s221
        %s223 = smul.u32 2, %s22
        %s224 = smul.u32 32, %s22
        %p225 = scmp.lt.s32.totalorder %s23, 1
        %s226 = scalar_select %p225, %s23, 1
        %p227 = scmp.lt.s32.totalorder %s224, 31
        %s228 = scalar_select %p227, %s224, 31
        %s229 = smul.addr %s226, 32
        %s230 = sadd.s32 %s228, %s229
        %s231 = smul.addr %s230, 8
        %s232 = scalar_lea.vmem %s3, %s231
        %s233 = smul.u32 32, %s22
        %v235 = vld [vmem:[%s192] sm:$0xff]
        %v236 = vld [vmem:[%s192 + $0x8] sm:$0xff]
        %v237 = vld [vmem:[%s192 + $0x10] sm:$0xff]
        %v238 = vld [vmem:[%s192 + $0x18] sm:$0xff]
        %v239 = vld [vmem:[%s192 + $0x20] sm:$0xff]
        %v240 = vld [vmem:[%s192 + $0x28] sm:$0xff]
        %v241 = vld [vmem:[%s192 + $0x30] sm:$0xff]
        %v242 = vld [vmem:[%s192 + $0x38] sm:$0xff]
        %v243 = vpack.c.bf16 %v237, %v235
        %v244 = vpack.c.bf16 %v238, %v236
        %v245 = vpack.c.bf16 %v241, %v239
        %v246 = vpack.c.bf16 %v242, %v240
        %v247 = vld [vmem:[#allocation4] sm:$0xf]
        %v248 = vld [vmem:[#allocation4 + $0x4] sm:$0xf]
        %v249 = vld [vmem:[#allocation4 + $0x8] sm:$0xf]
        %v250 = vld [vmem:[#allocation4 + $0xc] sm:$0xf]
        %v251 = vld [vmem:[%s2] sm:$0x1]
        %v253 = vlaneseq
        %v254 = vshrl.u32 %v253, 7
        %v255 = vsub.s32 0, %v254
        %v256 = vrot.slane %v251, %v255
        %258 = vxpose.xlu0.c.b16.start [1/8] %v243, 128
        %259 = vxpose.xlu0.c.b16.cont [2/8] %v245, 128
        %260 = vxpose.xlu0.c.b16.cont [3/8] 0, 128
        %261 = vxpose.xlu0.c.b16.cont [4/8] 0, 128
        %262 = vxpose.xlu0.c.b16.cont [5/8] 0, 128
        %263 = vxpose.xlu0.c.b16.cont [6/8] 0, 128
        %264 = vxpose.xlu0.c.b16.cont [7/8] 0, 128
        %265 = vxpose.xlu0.c.b16.end [8/8] 0, 128
        %v266 = vpop.trf.xlu0
        %v267 = vpop.trf.xlu0
        %v268 = vpop.trf.xlu0
        %v269 = vpop.trf.xlu0
        %v270 = vpop.trf.xlu0
        %v271 = vpop.trf.xlu0
        %v272 = vpop.trf.xlu0
        %v273 = vpop.trf.xlu0
        %274 = vxpose.xlu0.c.b16.start [1/8] %v244, 128
        %275 = vxpose.xlu0.c.b16.cont [2/8] %v246, 128
        %276 = vxpose.xlu0.c.b16.cont [3/8] 0, 128
        %277 = vxpose.xlu0.c.b16.cont [4/8] 0, 128
        %278 = vxpose.xlu0.c.b16.cont [5/8] 0, 128
        %279 = vxpose.xlu0.c.b16.cont [6/8] 0, 128
        %280 = vxpose.xlu0.c.b16.cont [7/8] 0, 128
        %281 = vxpose.xlu0.c.b16.end [8/8] 0, 128
        %v282 = vpop.trf.xlu0
        %v283 = vpop.trf.xlu0
        %v284 = vpop.trf.xlu0
        %v285 = vpop.trf.xlu0
        %v286 = vpop.trf.xlu0
        %v287 = vpop.trf.xlu0
        %v288 = vpop.trf.xlu0
        %v289 = vpop.trf.xlu0
        %v294 = vunpack.c.l.b16 %v247
        %v295 = vunpack.c.l.b16 %v248
        %v296 = vunpack.c.l.b16 %v249
        %v297 = vunpack.c.l.b16 %v250
        %v298 = vpack.c.b16 %v295, %v294
        %v299 = vpack.c.b16 %v297, %v296
        %vm302 = vcmask 261120
        %v304 = vsel %vm302, %v266, 0
        %v307 = vsel %vm302, %v267, 0
        %v310 = vsel %vm302, %v268, 0
        %v313 = vsel %vm302, %v269, 0
        %v316 = vsel %vm302, %v270, 0
        %v319 = vsel %vm302, %v271, 0
        %v322 = vsel %vm302, %v272, 0
        %v325 = vsel %vm302, %v273, 0
        %v328 = vsel %vm302, %v282, 0
        %v331 = vsel %vm302, %v283, 0
        %v334 = vsel %vm302, %v284, 0
        %v337 = vsel %vm302, %v285, 0
        %v340 = vsel %vm302, %v286, 0
        %v343 = vsel %vm302, %v287, 0
        %v346 = vsel %vm302, %v288, 0
        %v349 = vsel %vm302, %v289, 0
        %351 = vmatprep.subr.bf16.mxu0 0
        %352 = vmatpush1.bf16.msra.mxu0 %v298
        %353 = vmatprep.subr.bf16.mxu0 0
        %354 = vmatpush1.bf16.msra.mxu0 %v299
        %355 = vmatprep.subr.bf16.mxu0 0
        %356 = vmatpush1.bf16.msra.mxu0 0
        %357 = vmatprep.subr.bf16.mxu0 0
        %358 = vmatpush1.bf16.msra.mxu0 0
        %359 = vmatprep.subr.bf16.mxu0 0
        %360 = vmatpush1.bf16.msra.mxu0 0
        %361 = vmatprep.subr.bf16.mxu0 0
        %362 = vmatpush1.bf16.msra.mxu0 0
        %363 = vmatprep.subr.bf16.mxu0 0
        %364 = vmatpush1.bf16.msra.mxu0 0
        %365 = vmatprep.subr.bf16.mxu0 0
        %366 = vmatpush1.bf16.msra.mxu0 0
        %367 = vmatprep.subr.bf16.mxu0 0
        %368 = vmatpush1.bf16.msra.mxu0 0
        %369 = vmatprep.subr.bf16.mxu0 0
        %370 = vmatpush1.bf16.msra.mxu0 0
        %371 = vmatprep.subr.bf16.mxu0 0
        %372 = vmatpush1.bf16.msra.mxu0 0
        %373 = vmatprep.subr.bf16.mxu0 0
        %374 = vmatpush1.bf16.msra.mxu0 0
        %375 = vmatprep.subr.bf16.mxu0 0
        %376 = vmatpush1.bf16.msra.mxu0 0
        %377 = vmatprep.subr.bf16.mxu0 0
        %378 = vmatpush1.bf16.msra.mxu0 0
        %379 = vmatprep.subr.bf16.mxu0 0
        %380 = vmatpush1.bf16.msra.mxu0 0
        %381 = vmatprep.subr.bf16.mxu0 0
        %382 = vmatpush1.bf16.msra.mxu0 0
        %383 = vmatprep.mubr.bf16.mxu0 0
        %384 = vmatmul.mubr.bf16.gmra.mrb[0].mxu0 %v304
        %v385 = vpop.f32.mrb[0].mxu0
        %v386 = vadd.f32 %v256, %v385
        %v387 = vpop.f32.mrb[0].mxu0
        %v388 = vpop.f32.mrb[0].mxu0
        %v389 = vadd.f32 %v256, %v388
        %v390 = vpop.f32.mrb[0].mxu0
        %391 = vmatprep.mubr.bf16.mxu0 0
        %392 = vmatmul.mubr.bf16.gmra.mrb[0].mxu0 %v307
        %v393 = vpop.f32.mrb[0].mxu0
        %v394 = vadd.f32 %v256, %v393
        %v395 = vpop.f32.mrb[0].mxu0
        %v396 = vpop.f32.mrb[0].mxu0
        %v397 = vadd.f32 %v256, %v396
        %v398 = vpop.f32.mrb[0].mxu0
        %399 = vmatprep.mubr.bf16.mxu0 0
        %400 = vmatmul.mubr.bf16.gmra.mrb[0].mxu0 %v310
        %v401 = vpop.f32.mrb[0].mxu0
        %v402 = vadd.f32 %v256, %v401
        %v403 = vpop.f32.mrb[0].mxu0
        %v404 = vpop.f32.mrb[0].mxu0
        %v405 = vadd.f32 %v256, %v404
        %v406 = vpop.f32.mrb[0].mxu0
        %407 = vmatprep.mubr.bf16.mxu0 0
        %408 = vmatmul.mubr.bf16.gmra.mrb[0].mxu0 %v313
        %v409 = vpop.f32.mrb[0].mxu0
        %v410 = vadd.f32 %v256, %v409
        %v411 = vpop.f32.mrb[0].mxu0
        %v412 = vpop.f32.mrb[0].mxu0
        %v413 = vadd.f32 %v256, %v412
        %v414 = vpop.f32.mrb[0].mxu0
        %415 = vmatprep.mubr.bf16.mxu0 0
        %416 = vmatmul.mubr.bf16.gmra.mrb[0].mxu0 %v316
        %v417 = vpop.f32.mrb[0].mxu0
        %v418 = vadd.f32 %v256, %v417
        %v419 = vpop.f32.mrb[0].mxu0
        %v420 = vpop.f32.mrb[0].mxu0
        %v421 = vadd.f32 %v256, %v420
        %v422 = vpop.f32.mrb[0].mxu0
        %423 = vmatprep.mubr.bf16.mxu0 0
        %424 = vmatmul.mubr.bf16.gmra.mrb[0].mxu0 %v319
        %v425 = vpop.f32.mrb[0].mxu0
        %v426 = vadd.f32 %v256, %v425
        %v427 = vpop.f32.mrb[0].mxu0
        %v428 = vpop.f32.mrb[0].mxu0
        %v429 = vadd.f32 %v256, %v428
        %v430 = vpop.f32.mrb[0].mxu0
        %431 = vmatprep.mubr.bf16.mxu0 0
        %432 = vmatmul.mubr.bf16.gmra.mrb[0].mxu0 %v322
        %v433 = vpop.f32.mrb[0].mxu0
        %v434 = vadd.f32 %v256, %v433
        %v435 = vpop.f32.mrb[0].mxu0
        %v436 = vpop.f32.mrb[0].mxu0
        %v437 = vadd.f32 %v256, %v436
        %v438 = vpop.f32.mrb[0].mxu0
        %439 = vmatprep.mubr.bf16.mxu0 0
        %440 = vmatmul.mubr.bf16.gmra.mrb[0].mxu0 %v325
        %v441 = vpop.f32.mrb[0].mxu0
        %v442 = vadd.f32 %v256, %v441
        %v443 = vpop.f32.mrb[0].mxu0
        %v444 = vpop.f32.mrb[0].mxu0
        %v445 = vadd.f32 %v256, %v444
        %v446 = vpop.f32.mrb[0].mxu0
        %447 = vmatprep.mubr.bf16.mxu0 0
        %448 = vmatmul.mubr.bf16.gmra.mrb[0].mxu0 %v328
        %v449 = vpop.f32.mrb[0].mxu0
        %v450 = vadd.f32 %v256, %v449
        %v451 = vpop.f32.mrb[0].mxu0
        %v452 = vpop.f32.mrb[0].mxu0
        %v453 = vadd.f32 %v256, %v452
        %v454 = vpop.f32.mrb[0].mxu0
        %455 = vmatprep.mubr.bf16.mxu0 0
        %456 = vmatmul.mubr.bf16.gmra.mrb[0].mxu0 %v331
        %v457 = vpop.f32.mrb[0].mxu0
        %v458 = vadd.f32 %v256, %v457
        %v459 = vpop.f32.mrb[0].mxu0
        %v460 = vpop.f32.mrb[0].mxu0
        %v461 = vadd.f32 %v256, %v460
        %v462 = vpop.f32.mrb[0].mxu0
        %463 = vmatprep.mubr.bf16.mxu0 0
        %464 = vmatmul.mubr.bf16.gmra.mrb[0].mxu0 %v334
        %v465 = vpop.f32.mrb[0].mxu0
        %v466 = vadd.f32 %v256, %v465
        %v467 = vpop.f32.mrb[0].mxu0
        %v468 = vpop.f32.mrb[0].mxu0
        %v469 = vadd.f32 %v256, %v468
        %v470 = vpop.f32.mrb[0].mxu0
        %471 = vmatprep.mubr.bf16.mxu0 0
        %472 = vmatmul.mubr.bf16.gmra.mrb[0].mxu0 %v337
        %v473 = vpop.f32.mrb[0].mxu0
        %v474 = vadd.f32 %v256, %v473
        %v475 = vpop.f32.mrb[0].mxu0
        %v476 = vpop.f32.mrb[0].mxu0
        %v477 = vadd.f32 %v256, %v476
        %v478 = vpop.f32.mrb[0].mxu0
        %479 = vmatprep.mubr.bf16.mxu0 0
        %480 = vmatmul.mubr.bf16.gmra.mrb[0].mxu0 %v340
        %v481 = vpop.f32.mrb[0].mxu0
        %v482 = vadd.f32 %v256, %v481
        %v483 = vpop.f32.mrb[0].mxu0
        %v484 = vpop.f32.mrb[0].mxu0
        %v485 = vadd.f32 %v256, %v484
        %v486 = vpop.f32.mrb[0].mxu0
        %487 = vmatprep.mubr.bf16.mxu0 0
        %488 = vmatmul.mubr.bf16.gmra.mrb[0].mxu0 %v343
        %v489 = vpop.f32.mrb[0].mxu0
        %v490 = vadd.f32 %v256, %v489
        %v491 = vpop.f32.mrb[0].mxu0
        %v492 = vpop.f32.mrb[0].mxu0
        %v493 = vadd.f32 %v256, %v492
        %v494 = vpop.f32.mrb[0].mxu0
        %495 = vmatprep.mubr.bf16.mxu0 0
        %496 = vmatmul.mubr.bf16.gmra.mrb[0].mxu0 %v346
        %v497 = vpop.f32.mrb[0].mxu0
        %v498 = vadd.f32 %v256, %v497
        %v499 = vpop.f32.mrb[0].mxu0
        %v500 = vpop.f32.mrb[0].mxu0
        %v501 = vadd.f32 %v256, %v500
        %v502 = vpop.f32.mrb[0].mxu0
        %503 = vmatprep.mubr.bf16.mxu0 0
        %504 = vmatmul.mubr.bf16.gmra.mrb[0].mxu0 %v349
        %v505 = vpop.f32.mrb[0].mxu0
        %v506 = vadd.f32 %v256, %v505
        %v507 = vpop.f32.mrb[0].mxu0
        %v508 = vpop.f32.mrb[0].mxu0
        %v509 = vadd.f32 %v256, %v508
        %v510 = vpop.f32.mrb[0].mxu0
        %511 = vdwg.mxu0
        %vm512 = vcmask 523264
        %513 = vst.msk [vmem:[%s232] sm:$0xff] %vm512, %v386
        %514 = vst.msk [vmem:[%s232 + $0x8] sm:$0xff] %vm512, %v389
        %515 = vst.msk [vmem:[%s232 + $0x10] sm:$0xff] %vm512, %v394
        %516 = vst.msk [vmem:[%s232 + $0x18] sm:$0xff] %vm512, %v397
        %517 = vst.msk [vmem:[%s232 + $0x20] sm:$0xff] %vm512, %v402
        %518 = vst.msk [vmem:[%s232 + $0x28] sm:$0xff] %vm512, %v405
        %519 = vst.msk [vmem:[%s232 + $0x30] sm:$0xff] %vm512, %v410
        %520 = vst.msk [vmem:[%s232 + $0x38] sm:$0xff] %vm512, %v413
        %521 = vst.msk [vmem:[%s232 + $0x40] sm:$0xff] %vm512, %v418
        %522 = vst.msk [vmem:[%s232 + $0x48] sm:$0xff] %vm512, %v421
        %523 = vst.msk [vmem:[%s232 + $0x50] sm:$0xff] %vm512, %v426
        %524 = vst.msk [vmem:[%s232 + $0x58] sm:$0xff] %vm512, %v429
        %525 = vst.msk [vmem:[%s232 + $0x60] sm:$0xff] %vm512, %v434
        %526 = vst.msk [vmem:[%s232 + $0x68] sm:$0xff] %vm512, %v437
        %527 = vst.msk [vmem:[%s232 + $0x70] sm:$0xff] %vm512, %v442
        %528 = vst.msk [vmem:[%s232 + $0x78] sm:$0xff] %vm512, %v445
        %529 = vst.msk [vmem:[%s232 + $0x80] sm:$0xff] %vm512, %v450
        %530 = vst.msk [vmem:[%s232 + $0x88] sm:$0xff] %vm512, %v453
        %531 = vst.msk [vmem:[%s232 + $0x90] sm:$0xff] %vm512, %v458
        %532 = vst.msk [vmem:[%s232 + $0x98] sm:$0xff] %vm512, %v461
        %533 = vst.msk [vmem:[%s232 + $0xa0] sm:$0xff] %vm512, %v466
        %534 = vst.msk [vmem:[%s232 + $0xa8] sm:$0xff] %vm512, %v469
        %535 = vst.msk [vmem:[%s232 + $0xb0] sm:$0xff] %vm512, %v474
        %536 = vst.msk [vmem:[%s232 + $0xb8] sm:$0xff] %vm512, %v477
        %537 = vst.msk [vmem:[%s232 + $0xc0] sm:$0xff] %vm512, %v482
        %538 = vst.msk [vmem:[%s232 + $0xc8] sm:$0xff] %vm512, %v485
        %539 = vst.msk [vmem:[%s232 + $0xd0] sm:$0xff] %vm512, %v490
        %540 = vst.msk [vmem:[%s232 + $0xd8] sm:$0xff] %vm512, %v493
        %541 = vst.msk [vmem:[%s232 + $0xe0] sm:$0xff] %vm512, %v498
        %542 = vst.msk [vmem:[%s232 + $0xe8] sm:$0xff] %vm512, %v501
        %543 = vst.msk [vmem:[%s232 + $0xf0] sm:$0xff] %vm512, %v506
        %544 = vst.msk [vmem:[%s232 + $0xf8] sm:$0xff] %vm512, %v509
        %s545 = smul.u32 32, %s22
        %p546 = scmp.lt.s32.totalorder %s23, 1
        %s547 = scalar_select %p546, %s23, 1
        %p548 = scmp.lt.s32.totalorder %s545, 31
        %s549 = scalar_select %p548, %s545, 31
        %s550 = smul.addr %s547, 32
        %s551 = sadd.s32 %s549, %s550
        %s552 = smul.addr %s551, 8
        %s553 = scalar_lea.vmem %s3, %s552
        // Predicated region
        $region41: #{tpu_custom_call.1} parent=31 // pred_check
          %p554 = pneg %p120
        $region42: #{tpu_custom_call.1} parent=31 // pred_check_branch
          %556 = sbr.rel (%p554) target = $region44
        $region43: #{tpu_custom_call.1} parent=31 // pred_region
          %s557 = smul.u32 32, %s22
        $region44: #{tpu_custom_call.1} parent=31 // pred_fallthru
          _
      $region32: #{tpu_custom_call.1} parent=5 // pred_fallthru
        _
      %p558 = scmp.le.s32.totalorder 2, %s13
      // Predicated region
      $region45: #{tpu_custom_call.1} parent=5 // pred_check
        %p559 = pneg %p558
      $region46: #{tpu_custom_call.1} parent=5 // pred_check_branch
        %561 = sbr.rel (%p559) target = $region48
      $region47: #{tpu_custom_call.1} parent=5 // pred_region
        %s562 = ssub.s32 %s13, 2
        // Predicated region
        $region49: #{tpu_custom_call.1} parent=47 // pred_check
          %p563 = pneg %p126
        $region50: #{tpu_custom_call.1} parent=47 // pred_check_branch
          %565 = sbr.rel (%p563) target = $region52
        $region51: #{tpu_custom_call.1} parent=47 // pred_region
          %s566 = smul.u32 32, %s24
          %p567 = scmp.lt.s32.totalorder %s25, 1
          %s568 = scalar_select %p567, %s25, 1
          %p569 = scmp.lt.s32.totalorder %s566, 31
          %s570 = scalar_select %p569, %s566, 31
          %s571 = smul.addr %s568, 32
          %s572 = sadd.s32 %s570, %s571
          %s573 = smul.addr %s572, 8
          %s574 = scalar_lea.vmem %s3, %s573
        $region52: #{tpu_custom_call.1} parent=47 // pred_fallthru
          _
      $region48: #{tpu_custom_call.1} parent=5 // pred_fallthru
        _
    $region6: #{tpu_custom_call.1} parent=1 // loop_footer
      %s17 = sadd.s32 1, %s13
    $region7: #{tpu_custom_call.1} parent=1 // loop_footer_branch
      %12 = sbr.rel target = $region3
    $region8: #{tpu_custom_call.1} parent=1 // loop_exit
      _
    %575 = vsyncpa [#allocation3], 1
    %s576 = scalar_lea.sflag [#allocation3], 1
    %577 = vsyncpa %s576, 1
    %578 = vsyncpa [#allocation5], 1

</llo_original>
